<compile_context>
chip_gen: v7x
topology: tpu7x:2x2x1
jax: 0.10.0
libtpu: 0.0.40
codegen_flags: <defaults>
</compile_context>

<pallas_src>
import jax
import jax.numpy as jnp
from jax.experimental import pallas as pl
from jax.experimental.pallas import tpu as pltpu

_LANE = 128


def _splitter_kernel(w_ref, xT_ref, b_ref, o_ref):
    # (N, D) @ (D, block_b) on the MXU with f32 accumulation; the batch sits
    # on the lane axis so the elementwise tail and the store are lane-dense.
    z = jnp.dot(w_ref[...], xT_ref[...], preferred_element_type=jnp.float32)
    z = z + b_ref[...]                       # (N, 1) bias broadcast over lanes
    # sigmoid(z) = 0.5 * tanh(0.5 * z) + 0.5  -- one EUP transcendental.
    o_ref[...] = (0.5 * jnp.tanh(0.5 * z) + 0.5).astype(o_ref.dtype)


def _round_up(a, b):
    return ((a + b - 1) // b) * b


def _num_tensorcores():
    # Advisory only: used to decide whether forcing >=2 grid steps is worth it.
    try:
        return int(getattr(jax.devices()[0], "num_cores", 1) or 1)
    except Exception:
        return 1


def _pick_block_b(B, max_blk, num_cores):
    b_aligned = _round_up(max(B, 1), _LANE)
    if num_cores >= 2 and b_aligned > _LANE:
        # Ensure >=2 grid steps so a 2-TensorCore chip (v7x) can shard the
        # batch axis; skipped on single-TC chips (pure per-step overhead there).
        b_aligned = _round_up((b_aligned + num_cores - 1) // num_cores, _LANE)
    return max(_LANE, min(max_blk, b_aligned))


def base_splitter_forward(x, weight, bias, raw_t, *, block_b=None,
                          input_dtype=jnp.bfloat16, out_dtype=jnp.float32,
                          x_transposed=False, return_transposed=False):
    """x: (B, D) [or (D, B) if x_transposed]; weight: (N, D); bias: (N,);
    raw_t: (1, N)  ->  (B, N) in out_dtype (or (N, B) if return_transposed)."""
    x = jnp.asarray(x)
    weight = jnp.asarray(weight, jnp.float32)
    bias = jnp.asarray(bias, jnp.float32)
    raw_t = jnp.asarray(raw_t, jnp.float32)
    input_dtype = jnp.dtype(input_dtype)
    out_dtype = jnp.dtype(out_dtype)

    N, D = weight.shape
    if x_transposed:
        B = x.shape[1]
        xT = x
    else:
        B = x.shape[0]
        xT = x.T                                  # (D, B), batch on lanes
    xT = xT.astype(input_dtype)

    # Fold t = softplus(raw_t) into the linear layer (exact in f32).
    t_col = jax.nn.softplus(raw_t).reshape(N, 1)              # (N, 1) f32
    w_scaled = (weight * t_col).astype(input_dtype)           # (N, D)
    b_scaled = bias.reshape(N, 1) * t_col                     # (N, 1) f32

    if block_b is None:
        # TODO(synk): raise max_blk to 16K-32K (and optionally fp8 x) on v7x
        # once the chip generation can be queried robustly; 8192 keeps the
        # double-buffered tiles (~1 MiB x^T bf16 + ~0.5 MiB out f32) far below
        # every generation's scoped-VMEM default.
        block_b = _pick_block_b(B, 8192, _num_tensorcores())
    block_b = max(_LANE, _round_up(block_b, _LANE))

    n_blocks = max(1, -(-B // block_b))
    B_pad = n_blocks * block_b
    if B_pad != B:
        # Padded columns compute sigmoid(b*t) garbage that is sliced off below.
        xT = jnp.pad(xT, ((0, 0), (0, B_pad - B)))

    cost = pl.CostEstimate(
        flops=2 * B_pad * D * N,
        transcendentals=B_pad * N,                 # one tanh per element
        bytes_accessed=(D * B_pad * input_dtype.itemsize      # x^T read
                        + N * B_pad * out_dtype.itemsize      # out^T write
                        + N * D * input_dtype.itemsize        # W*t
                        + N * 4),                              # b*t
    )

    outT = pl.pallas_call(
        _splitter_kernel,
        out_shape=jax.ShapeDtypeStruct((N, B_pad), out_dtype),
        grid_spec=pltpu.PrefetchScalarGridSpec(
            num_scalar_prefetch=0,
            grid=(n_blocks,),
            in_specs=[
                pl.BlockSpec((N, D), lambda i: (0, 0)),        # scaled W (resident)
                pl.BlockSpec((D, block_b), lambda i: (0, i)),  # x^T tile (streamed)
                pl.BlockSpec((N, 1), lambda i: (0, 0)),        # scaled bias column
            ],
            out_specs=pl.BlockSpec((N, block_b), lambda i: (0, i)),
        ),
        compiler_params=pltpu.CompilerParams(
            dimension_semantics=("parallel",),
        ),
        cost_estimate=cost,
    )(w_scaled, xT, b_scaled)

    outT = outT[:, :B]
    return outT if return_transposed else outT.T


def base_splitter_reference(x, weight, bias, raw_t):
    logits = x @ weight.T + bias
    t = jax.nn.softplus(raw_t)
    return jax.nn.sigmoid(t * logits)


if __name__ == "__main__":
    # Module hyperparameters (small, consistent with the forward pass).
    input_dim = 32
    depth = 3
    num_nodes = 2 ** depth - 1          # 7
    batch = 8

    key = jax.random.PRNGKey(0)
    k_x, k_w, k_b, k_t = jax.random.split(key, 4)

    # Deterministic synthetic parameter init (xavier-uniform-like for raw_t,
    # uniform fan-in bound for the linear layer — matches shapes of __init__).
    bound_t = (6.0 / (1 + num_nodes)) ** 0.5
    raw_t = jax.random.uniform(
        k_t, (1, num_nodes), minval=-bound_t, maxval=bound_t, dtype=jnp.float32
    )
    bound_w = 1.0 / (input_dim ** 0.5)
    weight = jax.random.uniform(
        k_w, (num_nodes, input_dim), minval=-bound_w, maxval=bound_w,
        dtype=jnp.float32,
    )
    bias = jax.random.uniform(
        k_b, (num_nodes,), minval=-bound_w, maxval=bound_w, dtype=jnp.float32
    )

    x = jax.random.normal(k_x, (batch, input_dim), dtype=jnp.float32)

    ref = base_splitter_reference(x, weight, bias, raw_t)

    # f32 streaming path: should track the reference very closely.
    out_f32 = jax.block_until_ready(
        base_splitter_forward(x, weight, bias, raw_t, input_dtype=jnp.float32)
    )
    assert out_f32.shape == (batch, num_nodes)
    assert jnp.allclose(out_f32, ref, atol=2e-3, rtol=2e-3)

    # Default bf16 streaming path (halves HBM read traffic for x).
    out_bf16 = jax.block_until_ready(
        base_splitter_forward(x, weight, bias, raw_t)
    )
    assert out_bf16.shape == (batch, num_nodes)
    assert jnp.allclose(out_bf16, ref, atol=1e-2, rtol=1e-2)

    # Transposed in/out fast path (no wrapper-side transpose of x).
    out_T = jax.block_until_ready(
        base_splitter_forward(x.T, weight, bias, raw_t,
                              x_transposed=True, return_transposed=True)
    )
    assert out_T.shape == (num_nodes, batch)
    assert jnp.allclose(out_T.T, ref, atol=1e-2, rtol=1e-2)

    print("KERNEL_OK")
</pallas_src>

<mosaic_0001>
module attributes {stable_mosaic.version = 11 : i64} {
  func.func @_splitter_kernel(%arg0: i32, %arg1: memref<7x32xf32, #tpu.memory_space<vmem>>, %arg2: memref<32x128xf32, #tpu.memory_space<vmem>>, %arg3: memref<7x1xf32, #tpu.memory_space<vmem>>, %arg4: memref<7x128xf32, #tpu.memory_space<vmem>>) attributes {dimension_semantics = [#tpu.dimension_semantics<parallel>], iteration_bounds = array<i64: 1>, scalar_prefetch = 0 : i64, scratch_operands = 0 : i64, tpu.core_type = #tpu.core_type<tc>, window_params = [{pipeline_mode = #tpu.pipeline_mode<synchronous>, transform_indices = @transform_0, window_bounds = array<i64: 7, 32>}, {transform_indices = @transform_1, window_bounds = array<i64: 32, 128>}, {pipeline_mode = #tpu.pipeline_mode<synchronous>, transform_indices = @transform_2, window_bounds = array<i64: 7, 1>}, {transform_indices = @transform_3, window_bounds = array<i64: 7, 128>}]} {
    %c0 = arith.constant 0 : index
    %c0_0 = arith.constant 0 : index
    %0 = vector.load %arg1[%c0, %c0_0] : memref<7x32xf32, #tpu.memory_space<vmem>>, vector<7x32xf32>
    %c0_1 = arith.constant 0 : index
    %c0_2 = arith.constant 0 : index
    %1 = vector.load %arg2[%c0_1, %c0_2] : memref<32x128xf32, #tpu.memory_space<vmem>>, vector<32x128xf32>
    %cst = arith.constant dense<0.000000e+00> : vector<7x128xf32>
    %2 = tpu.matmul %0, %1, %cst {dimension_numbers = #tpu.dot_dimension_numbers<[1], [0], [0], [1], [0, 0, 1, 1], [], []>} : vector<7x32xf32>, vector<32x128xf32>, vector<7x128xf32> -> vector<7x128xf32>
    %c0_3 = arith.constant 0 : index
    %c0_4 = arith.constant 0 : index
    %3 = vector.load %arg3[%c0_3, %c0_4] : memref<7x1xf32, #tpu.memory_space<vmem>>, vector<7x1xf32>
    %4 = vector.broadcast %3 : vector<7x1xf32> to vector<7x128xf32>
    %5 = arith.addf %2, %4 : vector<7x128xf32>
    %cst_5 = arith.constant 5.000000e-01 : f32
    %6 = vector.broadcast %cst_5 : f32 to vector<7x128xf32>
    %7 = arith.mulf %6, %5 : vector<7x128xf32>
    %8 = math.tanh %7 : vector<7x128xf32>
    %cst_6 = arith.constant 5.000000e-01 : f32
    %9 = vector.broadcast %cst_6 : f32 to vector<7x128xf32>
    %10 = arith.mulf %9, %8 : vector<7x128xf32>
    %cst_7 = arith.constant 5.000000e-01 : f32
    %11 = vector.broadcast %cst_7 : f32 to vector<7x128xf32>
    %12 = arith.addf %10, %11 : vector<7x128xf32>
    %c0_8 = arith.constant 0 : index
    %c0_9 = arith.constant 0 : index
    %13 = vector.load %arg4[%c0_8, %c0_9] : memref<7x128xf32, #tpu.memory_space<vmem>>, vector<7x128xf32>
    tpu.vector_store %arg4[%c0_8, %c0_9], %12 {strides = array<i32>} : memref<7x128xf32, #tpu.memory_space<vmem>>, vector<7x128xf32>,
    return
  }
  func.func @transform_0(%arg0: i32) -> (i32, i32) {
    %c0_i32 = arith.constant 0 : i32
    %c0_i32_0 = arith.constant 0 : i32
    %c0_i32_1 = arith.constant 0 : i32
    return %c0_i32, %c0_i32_0 : i32, i32
  }
  func.func @transform_1(%arg0: i32) -> (i32, i32) {
    %c0_i32 = arith.constant 0 : i32
    %c0_i32_0 = arith.constant 0 : i32
    return %c0_i32, %arg0 : i32, i32
  }
  func.func @transform_2(%arg0: i32) -> (i32, i32) {
    %c0_i32 = arith.constant 0 : i32
    %c0_i32_0 = arith.constant 0 : i32
    %c0_i32_1 = arith.constant 0 : i32
    return %c0_i32, %c0_i32_0 : i32, i32
  }
  func.func @transform_3(%arg0: i32) -> (i32, i32) {
    %c0_i32 = arith.constant 0 : i32
    %c0_i32_0 = arith.constant 0 : i32
    return %c0_i32, %arg0 : i32, i32
  }
}

</mosaic_0001>

<llo_original>
// kernel: tpu_custom_call.1
$region0: #{tpu_custom_call.1}
  #allocation0 [shape = 'u32[]', space=smem, size = 0x4, offset = 0x4, fixed_abs, tag = 'smem constant byte address 0x4 - core index']
  #allocation1 [shape = 'u32[144,128]{1,0:T(1,128)}', space=vmem, size = 0x12000, scoped, tag = 'internal scratch']
  %s0 = inlined_call_operand.vmem [shape: f32[7,32], index: 0, kind: input, shape index: {}]
  %s1 = inlined_call_operand.hbm [shape: f32[32,128], index: 1, kind: input, shape index: {}]
  %s2 = inlined_call_operand.vmem [shape: f32[7,1], index: 2, kind: input, shape index: {}]
  %s3 = inlined_call_operand.hbm [shape: f32[7,128], index: 3, kind: output, shape index: {}]
  %s4 = sld [smem:[#allocation0]]
  $region26: #{tpu_custom_call.1} parent=0
    _
  %s6 = ssub.s32 1, %s4
  %s7 = scalar_select 0, %s6, %s4
  $region1: #{tpu_custom_call.1} parent=0
    #allocation2 [shape = 'u8[16384]{0}', space=vmem, size = 0x4000, scoped, tag = 'input window, operand 1, single buffered']
    #allocation3 [shape = 's32[1]{0}', space=sflag, size = 0x4, scoped, tag = 'scoped memory for tpu_custom_call.1']
    #allocation4 [shape = 's32[1]{0}', space=sflag, size = 0x4, scoped, tag = 'scoped memory for tpu_custom_call.1']
    #allocation5 [shape = 'u8[4096]{0}', space=vmem, size = 0x1000, scoped, tag = 'output window, operand 0, single buffered']
    %8 = vsyncpa [#allocation3], 0
    %9 = vsyncpa [#allocation4], 0
    // Predicated region
    $region2: #{tpu_custom_call.1} parent=1 // pred_check
      _
    $region3: #{tpu_custom_call.1} parent=1 // pred_check_branch
      %11 = sbr.rel (0) target = $region5
    $region4: #{tpu_custom_call.1} parent=1 // pred_region
      _
    $region5: #{tpu_custom_call.1} parent=1 // pred_fallthru
      _
    // Predicated region
    $region6: #{tpu_custom_call.1} parent=1 // pred_check
      _
    $region7: #{tpu_custom_call.1} parent=1 // pred_check_branch
      %13 = sbr.rel (0) target = $region9
    $region8: #{tpu_custom_call.1} parent=1 // pred_region
      %s15 = ssub.s32 512, 512
      %16 = vsyncadd [#allocation3], %s15
      %s17 = sshll.u32 [#allocation2], 4
      %s18 = int_to_ptr.vmem [resolvable:$true] %s17
      %23 = dma.hbm_to_vmem [thread:$0]  %s1, 512, %s18, [#allocation3], 128, 128, 8
    $region9: #{tpu_custom_call.1} parent=1 // pred_fallthru
      _
    // Predicated region
    $region10: #{tpu_custom_call.1} parent=1 // pred_check
      _
    $region11: #{tpu_custom_call.1} parent=1 // pred_check_branch
      %25 = sbr.rel (0) target = $region13
    $region12: #{tpu_custom_call.1} parent=1 // pred_region
      _
    $region13: #{tpu_custom_call.1} parent=1 // pred_fallthru
      _
    // Predicated region
    $region14: #{tpu_custom_call.1} parent=1 // pred_check
      _
    $region15: #{tpu_custom_call.1} parent=1 // pred_check_branch
      %27 = sbr.rel (0) target = $region17
    $region16: #{tpu_custom_call.1} parent=1 // pred_region
      %28 = dma.done [#allocation3], 512
    $region17: #{tpu_custom_call.1} parent=1 // pred_fallthru
      _
    %v29 = vld [vmem:[%s0] sm:$0x7f]
    %v30 = vld [vmem:[#allocation2] sm:$0xff]
    %v31 = vld [vmem:[#allocation2 + $0x8] sm:$0xff]
    %v32 = vld [vmem:[#allocation2 + $0x10] sm:$0xff]
    %v33 = vld [vmem:[#allocation2 + $0x18] sm:$0xff]
    %v34 = vld [vmem:[%s2] sm:$0x7f]
    %36 = vset.pattern.permute.xlu0 0
    %37 = vperm.xlu0 %36, %v34
    %v38 = vpop.permute.xlu0 %37
    %vm40 = vcmask 261120
    %v42 = vsel %vm40, %v29, 0
    %44 = vmatprep.subr.mxu0 0.0
    %45 = vmatpush1.msra.mxu0 %v30
    %46 = vmatprep.subr.mxu0 0.0
    %47 = vmatpush1.msra.mxu0 %v31
    %48 = vmatprep.subr.mxu0 0.0
    %49 = vmatpush1.msra.mxu0 %v32
    %50 = vmatprep.subr.mxu0 0.0
    %51 = vmatpush1.msra.mxu0 %v33
    %52 = vmatprep.subr.mxu0 0.0
    %53 = vmatpush1.msra.mxu0 0.0
    %54 = vmatprep.subr.mxu0 0.0
    %55 = vmatpush1.msra.mxu0 0.0
    %56 = vmatprep.subr.mxu0 0.0
    %57 = vmatpush1.msra.mxu0 0.0
    %58 = vmatprep.subr.mxu0 0.0
    %59 = vmatpush1.msra.mxu0 0.0
    %60 = vmatprep.subr.mxu0 0.0
    %61 = vmatpush1.msra.mxu0 0.0
    %62 = vmatprep.subr.mxu0 0.0
    %63 = vmatpush1.msra.mxu0 0.0
    %64 = vmatprep.subr.mxu0 0.0
    %65 = vmatpush1.msra.mxu0 0.0
    %66 = vmatprep.subr.mxu0 0.0
    %67 = vmatpush1.msra.mxu0 0.0
    %68 = vmatprep.subr.mxu0 0.0
    %69 = vmatpush1.msra.mxu0 0.0
    %70 = vmatprep.subr.mxu0 0.0
    %71 = vmatpush1.msra.mxu0 0.0
    %72 = vmatprep.subr.mxu0 0.0
    %73 = vmatpush1.msra.mxu0 0.0
    %74 = vmatprep.subr.mxu0 0.0
    %75 = vmatpush1.msra.mxu0 0.0
    %76 = vmatprep.subr.mxu0 0.0
    %77 = vmatpush1.msra.mxu0 0.0
    %78 = vmatprep.subr.mxu0 0.0
    %79 = vmatpush1.msra.mxu0 0.0
    %80 = vmatprep.subr.mxu0 0.0
    %81 = vmatpush1.msra.mxu0 0.0
    %82 = vmatprep.subr.mxu0 0.0
    %83 = vmatpush1.msra.mxu0 0.0
    %84 = vmatprep.subr.mxu0 0.0
    %85 = vmatpush1.msra.mxu0 0.0
    %86 = vmatprep.subr.mxu0 0.0
    %87 = vmatpush1.msra.mxu0 0.0
    %88 = vmatprep.subr.mxu0 0.0
    %89 = vmatpush1.msra.mxu0 0.0
    %90 = vmatprep.subr.mxu0 0.0
    %91 = vmatpush1.msra.mxu0 0.0
    %92 = vmatprep.subr.mxu0 0.0
    %93 = vmatpush1.msra.mxu0 0.0
    %94 = vmatprep.subr.mxu0 0.0
    %95 = vmatpush1.msra.mxu0 0.0
    %96 = vmatprep.subr.mxu0 0.0
    %97 = vmatpush1.msra.mxu0 0.0
    %98 = vmatprep.subr.mxu0 0.0
    %99 = vmatpush1.msra.mxu0 0.0
    %100 = vmatprep.subr.mxu0 0.0
    %101 = vmatpush1.msra.mxu0 0.0
    %102 = vmatprep.subr.mxu0 0.0
    %103 = vmatpush1.msra.mxu0 0.0
    %104 = vmatprep.subr.mxu0 0.0
    %105 = vmatpush1.msra.mxu0 0.0
    %106 = vmatprep.subr.mxu0 0.0
    %107 = vmatpush1.msra.mxu0 0.0
    %108 = vmatprep.mubr.f32.mxu0 0.0
    %109 = vmatmul.mubr.f32.gmra.mrb[0].mxu0 %v42
    %v110 = vpop.f32.mrb[0].mxu0
    %v111 = vadd.f32 %v38, %v110
    %v112 = vpop.f32.mrb[0].mxu0
    %113 = vdwg.mxu0
    %v114 = vmul.f32 %v111, 0.5
    %v115 = vtanh.pop %v114
    %v116 = vmul.f32 %v115, 0.5
    %v117 = vadd.f32 %v116, 0.5
    %118 = vst [vmem:[#allocation5] sm:$0x7f] %v117
    // Predicated region
    $region18: #{tpu_custom_call.1} parent=1 // pred_check
      _
    $region19: #{tpu_custom_call.1} parent=1 // pred_check_branch
      %120 = sbr.rel (0) target = $region21
    $region20: #{tpu_custom_call.1} parent=1 // pred_region
      %s122 = ssub.s32 128, 128
      %123 = vsyncadd [#allocation4], %s122
      %s125 = sshll.u32 [#allocation5], 4
      %s126 = int_to_ptr.vmem [resolvable:$true] %s125
      %128 = dma.vmem_to_hbm [thread:$0]  %s126, 128, %s3, [#allocation4]
    $region21: #{tpu_custom_call.1} parent=1 // pred_fallthru
      _
    // Predicated region
    $region22: #{tpu_custom_call.1} parent=1 // pred_check
      _
    $region23: #{tpu_custom_call.1} parent=1 // pred_check_branch
      %130 = sbr.rel (0) target = $region25
    $region24: #{tpu_custom_call.1} parent=1 // pred_region
      %131 = dma.done [#allocation4], 128
    $region25: #{tpu_custom_call.1} parent=1 // pred_fallthru
      _
    %132 = vsyncpa [#allocation3], 1
    %133 = vsyncpa [#allocation4], 1

</llo_original>
